<compile_context>
chip_gen: v7x
topology: tpu7x:2x2x1
jax: 0.10.0
libtpu: 0.0.40
codegen_flags: <defaults>
</compile_context>

<pallas_src>
import functools
import math

import jax
import jax.numpy as jnp
from jax.experimental import pallas as pl
from jax.experimental.pallas import tpu as pltpu

_LANES = 128
_SUBLANES = 8
_MAX_TILE_ROWS = 8192          # (8192, 128) f32 = 4 MiB per input block
_FAST_PATH_ELEMS = 1024        # < 1 f32 vreg -> plain JAX is strictly faster
_VMEM_LIMIT_BYTES = 48 * 1024 * 1024


def _fold_rows(sq):
    """Fold an (rows, 128) f32 tile into one (8, 128) partial-sum vreg."""
    rows = sq.shape[0]
    if rows % _SUBLANES == 0:
        # Pure vreg adds (VPU); split is along the (8,128) tile boundary.
        return sq.reshape(-1, _SUBLANES, _LANES).sum(axis=0)
    # Robust fallback (only hit for single-block, non-8-aligned row counts):
    # one sublane reduce, result placed in row 0 of the (8,128) output.
    col = jnp.sum(sq, axis=0, keepdims=True)                      # (1, 128)
    row_id = jax.lax.broadcasted_iota(jnp.int32, (_SUBLANES, _LANES), 0)
    return jnp.where(row_id == 0,
                     jnp.broadcast_to(col, (_SUBLANES, _LANES)),
                     jnp.zeros((_SUBLANES, _LANES), jnp.float32))


def _msle_partial_kernel(pred_ref, true_ref, out_ref, *, epsilon, valid_rows):
    """Emit one (8,128) partial sum per grid step.

    valid_rows is None when every block is fully in-bounds; otherwise it is
    the (static) total number of valid rows and out-of-bounds rows of the
    partial last block are masked to a zero contribution.
    """
    p = jnp.maximum(pred_ref[...].astype(jnp.float32), 0.0)
    t = true_ref[...].astype(jnp.float32)
    if valid_rows is not None:
        rows = p.shape[0]
        row_idx = (pl.program_id(0) * rows
                   + jax.lax.broadcasted_iota(jnp.int32, (rows, 1), 0))
        valid = row_idx < valid_rows
        # log(1+eps) - log(1+eps) == 0 -> masked rows contribute nothing.
        p = jnp.where(valid, p, 1.0)
        t = jnp.where(valid, t, 1.0)
    d = jnp.log(p + epsilon) - jnp.log(t + epsilon)
    out_ref[...] = _fold_rows(d * d)


def _msle_none_kernel(pred_ref, true_ref, out_ref, *, epsilon):
    # Out-of-bounds rows of a partial last block are dropped by Pallas on the
    # masked store, so no in-kernel masking is needed here.
    p = jnp.maximum(pred_ref[...].astype(jnp.float32), 0.0)
    t = true_ref[...].astype(jnp.float32)
    d = jnp.log(p + epsilon) - jnp.log(t + epsilon)
    out_ref[...] = (d * d).astype(out_ref.dtype)


def _plain_msle(y_pred, y_true, epsilon):
    p = jnp.maximum(y_pred.astype(jnp.float32), 0.0)
    lp = jnp.log(p + epsilon)
    lt = jnp.log(y_true.astype(jnp.float32) + epsilon)
    return (lp - lt) ** 2


def _as_slab(x, rows_valid, n):
    """(rows_valid, 128) slab in the ORIGINAL dtype.

    Free reshape when n % 128 == 0 (no copy).  Otherwise a pad with 1.0 is
    required (padded elements contribute exactly 0 to the reduction).
    """
    flat = jnp.reshape(x, (-1,))
    padded_n = rows_valid * _LANES
    if padded_n != n:
        # TODO(synk): the remaining full-copy pad for element counts that are
        # not a multiple of 128 could be removed with a 1-D masked kernel.
        flat = jnp.pad(flat, (0, padded_n - n),
                       constant_values=jnp.asarray(1.0, flat.dtype))
    return flat.reshape(rows_valid, _LANES)


def msle_loss(y_pred, y_true, epsilon, reduction="mean"):
    assert y_pred.shape == y_true.shape, (
        f"Shapes of y_pred and y_true do not match: "
        f"{y_pred.shape} vs {y_true.shape}"
    )
    if reduction not in ("mean", "sum", "none"):
        raise ValueError(f"Invalid reduction method: {reduction}")

    epsilon = float(epsilon)
    orig_shape = y_pred.shape
    out_dtype = jnp.result_type(y_pred.dtype, y_true.dtype)
    n = int(math.prod(orig_shape)) if orig_shape else 1

    # ---- Tiny-input fast path: launch overhead dominates below ~1 vreg. ----
    if n < _FAST_PATH_ELEMS:
        sq = _plain_msle(y_pred, y_true, epsilon)
        if reduction == "none":
            return sq.astype(out_dtype)
        # NOTE: reference returns the MEAN for reduction='sum' as well.
        return jnp.mean(sq).astype(out_dtype)

    # ---- Slab + balanced block sizing. ----
    rows_valid = pl.cdiv(n, _LANES)
    min_itemsize = min(jnp.dtype(y_pred.dtype).itemsize,
                       jnp.dtype(y_true.dtype).itemsize)
    row_align = max(_SUBLANES, 32 // max(1, min_itemsize))  # f32:8 bf16:16 i8:32

    num_blocks = pl.cdiv(rows_valid, _MAX_TILE_ROWS)
    if num_blocks > 1 and num_blocks % 2:
        num_blocks += 1                     # even split across v7x's two TCs
    if num_blocks == 1:
        # Block == full array dims (always legal), no masking needed.
        tile_rows = rows_valid
    else:
        tile_rows = ((pl.cdiv(rows_valid, num_blocks) + row_align - 1)
                     // row_align) * row_align
        num_blocks = pl.cdiv(rows_valid, tile_rows)   # drop fully-empty blocks
    needs_row_mask = (num_blocks * tile_rows) != rows_valid

    pred2d = _as_slab(y_pred, rows_valid, n)
    true2d = _as_slab(y_true, rows_valid, n)

    grid = (num_blocks,)
    in_specs = [
        pl.BlockSpec((tile_rows, _LANES), lambda i: (i, 0)),
        pl.BlockSpec((tile_rows, _LANES), lambda i: (i, 0)),
    ]
    cp = pltpu.CompilerParams(
        dimension_semantics=("parallel",),
        vmem_limit_bytes=_VMEM_LIMIT_BYTES,
    )

    if reduction in ("mean", "sum"):
        partials = pl.pallas_call(
            functools.partial(
                _msle_partial_kernel,
                epsilon=epsilon,
                valid_rows=rows_valid if needs_row_mask else None,
            ),
            out_shape=jax.ShapeDtypeStruct(
                (num_blocks, _SUBLANES, _LANES), jnp.float32
            ),
            grid_spec=pltpu.PrefetchScalarGridSpec(
                num_scalar_prefetch=0,
                grid=grid,
                in_specs=in_specs,
                # One (8,128) partial-sum tile per grid index; leading dim is
                # squeezed so the kernel sees an (8,128) ref.
                out_specs=pl.BlockSpec(
                    (None, _SUBLANES, _LANES), lambda i: (i, 0, 0)
                ),
            ),
            compiler_params=cp,
        )(pred2d, true2d)
        # Tiny final reduce (num_blocks*8*128 floats) in plain JAX.
        total = jnp.sum(partials, dtype=jnp.float32)
        # NOTE: reference returns the MEAN for both "mean" and "sum".
        return (total / jnp.float32(n)).astype(out_dtype)

    # reduction == "none"
    out2d = pl.pallas_call(
        functools.partial(_msle_none_kernel, epsilon=epsilon),
        out_shape=jax.ShapeDtypeStruct((rows_valid, _LANES), out_dtype),
        grid_spec=pltpu.PrefetchScalarGridSpec(
            num_scalar_prefetch=0,
            grid=grid,
            in_specs=in_specs,
            out_specs=pl.BlockSpec((tile_rows, _LANES), lambda i: (i, 0)),
        ),
        compiler_params=cp,
    )(pred2d, true2d)
    if rows_valid * _LANES == n:
        # No element padding was added -> free reshape.
        return out2d.reshape(orig_shape)
    return out2d.reshape(-1)[:n].reshape(orig_shape)


def _ref_msle(y_pred, y_true, epsilon, reduction="mean"):
    sq = _plain_msle(y_pred, y_true, epsilon)
    if reduction in ("mean", "sum"):
        return jnp.mean(sq)
    return sq


if __name__ == "__main__":
    key = jax.random.PRNGKey(0)
    k1, k2, k3, k4 = jax.random.split(key, 4)
    eps = 1e-6

    # Case 1: NCHW-like inputs (batch=2, channels=4, spatial=16x16).
    y_pred = jax.random.normal(k1, (2, 4, 16, 16), dtype=jnp.float32)
    y_true = jax.random.uniform(k2, (2, 4, 16, 16), dtype=jnp.float32) * 2.0

    out_mean = jax.block_until_ready(msle_loss(y_pred, y_true, eps, "mean"))
    out_sum = jax.block_until_ready(msle_loss(y_pred, y_true, eps, "sum"))
    out_none = jax.block_until_ready(msle_loss(y_pred, y_true, eps, "none"))

    ref_mean = _ref_msle(y_pred, y_true, eps, "mean")
    ref_none = _ref_msle(y_pred, y_true, eps, "none")
    assert jnp.allclose(out_mean, ref_mean, rtol=1e-5, atol=1e-5)
    assert jnp.allclose(out_sum, ref_mean, rtol=1e-5, atol=1e-5)  # 'sum' quirk
    assert out_none.shape == y_pred.shape
    assert jnp.allclose(out_none, ref_none, rtol=1e-5, atol=1e-5)

    # Case 2: row count (51) not a multiple of 8 -> block equals the full
    # array dims and the robust fold path is exercised.
    y_pred2 = jax.random.normal(k3, (17, 3, 128), dtype=jnp.float32)
    y_true2 = jax.random.uniform(k4, (17, 3, 128), dtype=jnp.float32) * 3.0

    out_mean2 = jax.block_until_ready(msle_loss(y_pred2, y_true2, eps, "mean"))
    out_none2 = jax.block_until_ready(msle_loss(y_pred2, y_true2, eps, "none"))
    assert jnp.allclose(out_mean2, _ref_msle(y_pred2, y_true2, eps, "mean"),
                        rtol=1e-5, atol=1e-5)
    assert out_none2.shape == y_pred2.shape
    assert jnp.allclose(out_none2, _ref_msle(y_pred2, y_true2, eps, "none"),
                        rtol=1e-5, atol=1e-5)

    print("KERNEL_OK")
</pallas_src>

<mosaic_0001>
module attributes {stable_mosaic.version = 11 : i64} {
  func.func @_msle_partial_kernel(%arg0: i32, %arg1: memref<16x128xf32, #tpu.memory_space<vmem>>, %arg2: memref<16x128xf32, #tpu.memory_space<vmem>>, %arg3: memref<1x8x128xf32, #tpu.memory_space<vmem>>) attributes {dimension_semantics = [#tpu.dimension_semantics<parallel>], iteration_bounds = array<i64: 1>, scalar_prefetch = 0 : i64, scratch_operands = 0 : i64, tpu.core_type = #tpu.core_type<tc>, window_params = [{transform_indices = @transform_0, window_bounds = array<i64: 16, 128>}, {transform_indices = @transform_1, window_bounds = array<i64: 16, 128>}, {transform_indices = @transform_2, window_bounds = array<i64: 1, 8, 128>}]} {
    %c0 = arith.constant 0 : index
    %c0_0 = arith.constant 0 : index
    %0 = vector.load %arg1[%c0, %c0_0] : memref<16x128xf32, #tpu.memory_space<vmem>>, vector<16x128xf32>
    %cst = arith.constant 0.000000e+00 : f32
    %1 = vector.broadcast %cst : f32 to vector<16x128xf32>
    %2 = arith.maximumf %0, %1 : vector<16x128xf32>
    %c0_1 = arith.constant 0 : index
    %c0_2 = arith.constant 0 : index
    %3 = vector.load %arg2[%c0_1, %c0_2] : memref<16x128xf32, #tpu.memory_space<vmem>>, vector<16x128xf32>
    %cst_3 = arith.constant 9.99999997E-7 : f32
    %4 = vector.broadcast %cst_3 : f32 to vector<16x128xf32>
    %5 = arith.addf %2, %4 : vector<16x128xf32>
    %6 = math.log %5 : vector<16x128xf32>
    %cst_4 = arith.constant 9.99999997E-7 : f32
    %7 = vector.broadcast %cst_4 : f32 to vector<16x128xf32>
    %8 = arith.addf %3, %7 : vector<16x128xf32>
    %9 = math.log %8 : vector<16x128xf32>
    %10 = arith.subf %6, %9 : vector<16x128xf32>
    %11 = arith.mulf %10, %10 : vector<16x128xf32>
    %12 = vector.shape_cast %11 : vector<16x128xf32> to vector<2x8x128xf32>
    %cst_5 = arith.constant dense<0.000000e+00> : vector<8x128xf32>
    %13 = vector.multi_reduction <add>, %12, %cst_5 [0] : vector<2x8x128xf32> to vector<8x128xf32>
    %c0_6 = arith.constant 0 : index
    %c0_7 = arith.constant 0 : index
    %c0_8 = arith.constant 0 : index
    %14 = vector.load %arg3[%c0_6, %c0_7, %c0_8] : memref<1x8x128xf32, #tpu.memory_space<vmem>>, vector<1x8x128xf32>
    %15 = vector.shape_cast %14 : vector<1x8x128xf32> to vector<8x128xf32>
    %16 = vector.shape_cast %13 : vector<8x128xf32> to vector<1x8x128xf32>
    tpu.vector_store %arg3[%c0_6, %c0_7, %c0_8], %16 {strides = array<i32>} : memref<1x8x128xf32, #tpu.memory_space<vmem>>, vector<1x8x128xf32>,
    return
  }
  func.func @transform_0(%arg0: i32) -> (i32, i32) {
    %c0_i32 = arith.constant 0 : i32
    %c0_i32_0 = arith.constant 0 : i32
    return %arg0, %c0_i32 : i32, i32
  }
  func.func @transform_1(%arg0: i32) -> (i32, i32) {
    %c0_i32 = arith.constant 0 : i32
    %c0_i32_0 = arith.constant 0 : i32
    return %arg0, %c0_i32 : i32, i32
  }
  func.func @transform_2(%arg0: i32) -> (i32, i32, i32) {
    %c0_i32 = arith.constant 0 : i32
    %c0_i32_0 = arith.constant 0 : i32
    %c0_i32_1 = arith.constant 0 : i32
    return %arg0, %c0_i32, %c0_i32_0 : i32, i32, i32
  }
}

</mosaic_0001>

<llo_original>
// kernel: tpu_custom_call.1
$region0: #{tpu_custom_call.1}
  #allocation0 [shape = 'u32[]', space=smem, size = 0x4, offset = 0x4, fixed_abs, tag = 'smem constant byte address 0x4 - core index']
  #allocation1 [shape = 'u32[144,128]{1,0:T(1,128)}', space=vmem, size = 0x12000, scoped, tag = 'internal scratch']
  %s0 = inlined_call_operand.hbm [shape: f32[16,128], index: 0, kind: input, shape index: {}]
  %s1 = inlined_call_operand.hbm [shape: f32[16,128], index: 1, kind: input, shape index: {}]
  %s2 = inlined_call_operand.hbm [shape: f32[1,8,128], index: 2, kind: output, shape index: {}]
  %s3 = sld [smem:[#allocation0]]
  $region26: #{tpu_custom_call.1} parent=0
    _
  %s5 = ssub.s32 1, %s3
  %s6 = scalar_select 0, %s5, %s3
  $region1: #{tpu_custom_call.1} parent=0
    #allocation2 [shape = 'u8[8192]{0}', space=vmem, size = 0x2000, scoped, tag = 'input window, operand 0, single buffered']
    #allocation3 [shape = 's32[1]{0}', space=sflag, size = 0x4, scoped, tag = 'scoped memory for tpu_custom_call.1']
    #allocation4 [shape = 's32[1]{0}', space=sflag, size = 0x4, scoped, tag = 'scoped memory for tpu_custom_call.1']
    #allocation5 [shape = 'u8[8192]{0}', space=vmem, size = 0x2000, scoped, tag = 'input window, operand 1, single buffered']
    #allocation6 [shape = 's32[1]{0}', space=sflag, size = 0x4, scoped, tag = 'scoped memory for tpu_custom_call.1']
    #allocation7 [shape = 'u8[4096]{0}', space=vmem, size = 0x1000, scoped, tag = 'output window, operand 0, single buffered']
    %7 = vsyncpa [#allocation3], 0
    %8 = vsyncpa [#allocation6], 0
    %9 = vsyncpa [#allocation4], 0
    // Predicated region
    $region2: #{tpu_custom_call.1} parent=1 // pred_check
      _
    $region3: #{tpu_custom_call.1} parent=1 // pred_check_branch
      %11 = sbr.rel (0) target = $region5
    $region4: #{tpu_custom_call.1} parent=1 // pred_region
      %s13 = ssub.s32 256, 256
      %14 = vsyncadd [#allocation3], %s13
      %s15 = sshll.u32 [#allocation2], 4
      %s16 = int_to_ptr.vmem [resolvable:$true] %s15
      %21 = dma.hbm_to_vmem [thread:$0]  %s0, 256, %s16, [#allocation3], 128, 128, 8
    $region5: #{tpu_custom_call.1} parent=1 // pred_fallthru
      _
    // Predicated region
    $region6: #{tpu_custom_call.1} parent=1 // pred_check
      _
    $region7: #{tpu_custom_call.1} parent=1 // pred_check_branch
      %23 = sbr.rel (0) target = $region9
    $region8: #{tpu_custom_call.1} parent=1 // pred_region
      %s25 = ssub.s32 256, 256
      %26 = vsyncadd [#allocation6], %s25
      %s27 = sshll.u32 [#allocation5], 4
      %s28 = int_to_ptr.vmem [resolvable:$true] %s27
      %33 = dma.hbm_to_vmem [thread:$0]  %s1, 256, %s28, [#allocation6], 128, 128, 8
    $region9: #{tpu_custom_call.1} parent=1 // pred_fallthru
      _
    // Predicated region
    $region10: #{tpu_custom_call.1} parent=1 // pred_check
      _
    $region11: #{tpu_custom_call.1} parent=1 // pred_check_branch
      %35 = sbr.rel (0) target = $region13
    $region12: #{tpu_custom_call.1} parent=1 // pred_region
      %36 = dma.done [#allocation3], 256
    $region13: #{tpu_custom_call.1} parent=1 // pred_fallthru
      _
    // Predicated region
    $region14: #{tpu_custom_call.1} parent=1 // pred_check
      _
    $region15: #{tpu_custom_call.1} parent=1 // pred_check_branch
      %38 = sbr.rel (0) target = $region17
    $region16: #{tpu_custom_call.1} parent=1 // pred_region
      %39 = dma.done [#allocation6], 256
    $region17: #{tpu_custom_call.1} parent=1 // pred_fallthru
      _
    %v40 = vld [vmem:[#allocation2] sm:$0xff]
    %v41 = vld [vmem:[#allocation2 + $0x8] sm:$0xff]
    %v42 = vmax.f32 %v40, 0.0
    %v43 = vmax.f32 %v41, 0.0
    %v44 = vld [vmem:[#allocation5] sm:$0xff]
    %v45 = vld [vmem:[#allocation5 + $0x8] sm:$0xff]
    %v46 = vadd.f32 %v42, 1e-06
    %v47 = vadd.f32 %v43, 1e-06
    %v48 = vlog2.pop %v46
    %v49 = vmul.f32 %v48, 0.6931472
    %v50 = vlog2.pop %v47
    %v51 = vmul.f32 %v50, 0.6931472
    %v52 = vadd.f32 %v44, 1e-06
    %v53 = vadd.f32 %v45, 1e-06
    %v54 = vlog2.pop %v52
    %v55 = vmul.f32 %v54, 0.6931472
    %v56 = vlog2.pop %v53
    %v57 = vmul.f32 %v56, 0.6931472
    %v58 = vsub.f32 %v49, %v55
    %v59 = vsub.f32 %v51, %v57
    %v60 = vmul.f32 %v58, %v58
    %v61 = vmul.f32 %v59, %v59
    %v62 = vadd.f32 %v60, %v61
    %63 = vst [vmem:[#allocation7] sm:$0xff] %v62
    // Predicated region
    $region18: #{tpu_custom_call.1} parent=1 // pred_check
      _
    $region19: #{tpu_custom_call.1} parent=1 // pred_check_branch
      %65 = sbr.rel (0) target = $region21
    $region20: #{tpu_custom_call.1} parent=1 // pred_region
      %s67 = ssub.s32 128, 128
      %68 = vsyncadd [#allocation4], %s67
      %s70 = sshll.u32 [#allocation7], 4
      %s71 = int_to_ptr.vmem [resolvable:$true] %s70
      %73 = dma.vmem_to_hbm [thread:$0]  %s71, 128, %s2, [#allocation4]
    $region21: #{tpu_custom_call.1} parent=1 // pred_fallthru
      _
    // Predicated region
    $region22: #{tpu_custom_call.1} parent=1 // pred_check
      _
    $region23: #{tpu_custom_call.1} parent=1 // pred_check_branch
      %75 = sbr.rel (0) target = $region25
    $region24: #{tpu_custom_call.1} parent=1 // pred_region
      %76 = dma.done [#allocation4], 128
    $region25: #{tpu_custom_call.1} parent=1 // pred_fallthru
      _
    %77 = vsyncpa [#allocation3], 1
    %78 = vsyncpa [#allocation6], 1
    %79 = vsyncpa [#allocation4], 1

</llo_original>
